<compile_context>
chip_gen: v7x
topology: tpu7x:2x2x1
jax: 0.10.0
libtpu: 0.0.40
codegen_flags: <defaults>
</compile_context>

<pallas_src>
import functools

import jax
import jax.numpy as jnp
import numpy as np
from jax.experimental import pallas as pl
from jax.experimental.pallas import tpu as pltpu

BN_EPS = 1e-5
LANE = 128


def _round_up(n, m):
    return ((n + m - 1) // m) * m


def _swish(x):
    # swish(x) = x * sigmoid(x) = 0.5 * x * (1 + tanh(0.5 * x))
    # One EUP op (tanh); the extra mul/add ride on the otherwise-idle VALU.
    return 0.5 * x * (1.0 + jnp.tanh(0.5 * x))


def actor_kernel(x_ref, slab_ref, out_ref, *,
                 s_in, h0p, h1p, outp, r_w1, r_wf, r_par):
    f32 = jnp.float32

    # Static slices into the single bf16 parameter slab (zero runtime cost).
    w0 = slab_ref[0:s_in, 0:h0p]                    # (S,   H0P)  bf16
    w1 = slab_ref[r_w1:r_w1 + h0p, 0:h1p]           # (H0P, H1P)  bf16
    wf = slab_ref[r_wf:r_wf + h1p, 0:outp]          # (H1P, OUTP) bf16
    b0 = slab_ref[r_par + 0:r_par + 1, 0:h0p].astype(f32)
    gamma = slab_ref[r_par + 1:r_par + 2, 0:h0p].astype(f32)
    beta = slab_ref[r_par + 2:r_par + 3, 0:h0p].astype(f32)
    b1 = slab_ref[r_par + 3:r_par + 4, 0:h1p].astype(f32)
    bf = slab_ref[r_par + 4:r_par + 5, 0:outp].astype(f32)

    # bf16 MXU inputs, f32 accumulation everywhere.
    x = x_ref[...].astype(jnp.bfloat16)

    # --- layer 0: Linear + swish ---
    h0 = jnp.dot(x, w0, preferred_element_type=f32) + b0
    h0 = _swish(h0)

    # --- BatchNorm1d (training-mode batch statistics, biased variance) ---
    # Single stacked pass: one reduction call over [h0 | h0*h0].
    sums = jnp.sum(jnp.concatenate([h0, h0 * h0], axis=1),
                   axis=0, keepdims=True)
    inv_b = 1.0 / h0.shape[0]
    mean = sums[:, :h0p] * inv_b
    var = jnp.maximum(sums[:, h0p:] * inv_b - mean * mean, 0.0)
    h0n = (h0 - mean) * jax.lax.rsqrt(var + BN_EPS) * gamma + beta

    # --- layer 1: Linear + swish ---
    h1 = jnp.dot(h0n.astype(jnp.bfloat16), w1,
                 preferred_element_type=f32) + b1
    h1 = _swish(h1)

    # --- output head: Linear + tanh; store only the real action columns ---
    act = jnp.tanh(jnp.dot(h1.astype(jnp.bfloat16), wf,
                           preferred_element_type=f32) + bf)
    out_ref[...] = act[:, :out_ref.shape[1]].astype(out_ref.dtype)


def actor_forward(x, packed):
    """Fused actor forward for a whole batch in one pallas_call (2 input DMAs)."""
    dims = packed["dims"]
    B = x.shape[0]
    kernel = functools.partial(
        actor_kernel,
        s_in=dims["s_in"], h0p=dims["h0p"], h1p=dims["h1p"], outp=dims["outp"],
        r_w1=dims["r_w1"], r_wf=dims["r_wf"], r_par=dims["r_par"])
    vmem = pl.BlockSpec(memory_space=pltpu.MemorySpace.VMEM)
    return pl.pallas_call(
        kernel,
        out_shape=jax.ShapeDtypeStruct((B, dims["action_size"]), jnp.float32),
        in_specs=[vmem, vmem],
        out_specs=vmem,
    )(x, packed["slab"])


def init_actor_params(key, state_size, linear_dim, action_size):
    """Deterministic init mirroring the PyTorch module's reset_parameters.

    hidden_init in the reference uses weight.size()[0] == out_features as
    'fan_in'; we replicate that exact behavior.  Biases keep PyTorch's default
    U(-1/sqrt(in_features), +1/sqrt(in_features)) init.
    """
    H0, H1 = linear_dim
    k = jax.random.split(key, 6)

    def uniform(key, shape, lim):
        return jax.random.uniform(key, shape, jnp.float32, -lim, lim)

    # Weights stored transposed: (in, out), so the kernel computes x @ W + b.
    lim0 = 1.0 / np.sqrt(H0)          # hidden_init -> 1/sqrt(out_features)
    lim1 = 1.0 / np.sqrt(H1)
    return {
        "w0": uniform(k[0], (state_size, H0), lim0),
        "b0": uniform(k[1], (1, H0), 1.0 / np.sqrt(state_size)),
        "w1": uniform(k[2], (H0, H1), lim1),
        "b1": uniform(k[3], (1, H1), 1.0 / np.sqrt(H0)),
        "wf": uniform(k[4], (H1, action_size), 0.003),
        "bf": uniform(k[5], (1, action_size), 1.0 / np.sqrt(H1)),
        # BatchNorm1d affine params (default gamma=1, beta=0).
        "gamma": jnp.ones((1, H0), jnp.float32),
        "beta": jnp.zeros((1, H0), jnp.float32),
    }


def pack_actor_params(params, slab_dtype=jnp.bfloat16):
    """Packs ALL parameters into one lane-padded (rows, 128) slab.

    Layout (rows):
      [0,            s_pad)  : w0  (state_size rows used)
      [r_w1, r_w1 +  h0p  )  : w1  (H0 rows used)
      [r_wf, r_wf +  h1p  )  : wf  (H1 rows used)
      [r_par, r_par + 8   )  : b0, gamma, beta, b1, bf, 3 spare rows
    All columns zero-padded to 128 lanes; row offsets aligned to the bf16
    (16, 128) tile so the MXU weight blocks need no relayout.
    """
    S, H0 = params["w0"].shape
    H1 = params["w1"].shape[1]
    A = params["wf"].shape[1]
    subl = 16 if slab_dtype == jnp.bfloat16 else 8
    s_pad = _round_up(S, subl)
    h0p = _round_up(H0, LANE)
    h1p = _round_up(H1, LANE)
    outp = _round_up(A, LANE)
    width = max(h0p, h1p, outp)
    r_w1 = s_pad
    r_wf = r_w1 + h0p
    r_par = r_wf + h1p
    n_rows = r_par + 8

    slab = jnp.zeros((n_rows, width), jnp.float32)
    slab = slab.at[0:S, 0:H0].set(params["w0"])
    slab = slab.at[r_w1:r_w1 + H0, 0:H1].set(params["w1"])
    slab = slab.at[r_wf:r_wf + H1, 0:A].set(params["wf"])
    slab = slab.at[r_par + 0, 0:H0].set(params["b0"][0])
    slab = slab.at[r_par + 1, 0:H0].set(params["gamma"][0])
    slab = slab.at[r_par + 2, 0:H0].set(params["beta"][0])
    slab = slab.at[r_par + 3, 0:H1].set(params["b1"][0])
    slab = slab.at[r_par + 4, 0:A].set(params["bf"][0])

    return {
        "slab": slab.astype(slab_dtype),
        "dims": dict(s_in=S, h0p=h0p, h1p=h1p, outp=outp,
                     r_w1=r_w1, r_wf=r_wf, r_par=r_par, action_size=A),
    }


def actor_reference(x, params):
    """Pure-JAX f32 reference (exact sigmoid / two-pass BN) for correctness."""
    h0 = x @ params["w0"] + params["b0"]
    h0 = h0 * jax.nn.sigmoid(h0)
    mean = jnp.mean(h0, axis=0, keepdims=True)
    var = jnp.mean((h0 - mean) ** 2, axis=0, keepdims=True)
    h0n = (h0 - mean) / jnp.sqrt(var + BN_EPS) * params["gamma"] + params["beta"]
    h1 = h0n @ params["w1"] + params["b1"]
    h1 = h1 * jax.nn.sigmoid(h1)
    return jnp.tanh(h1 @ params["wf"] + params["bf"])


if __name__ == "__main__":
    # Shapes consistent with the module: state_size=8, linear_dim=(32, 32),
    # action_size=2.  Batch=256 (>=128, multiple of 8): batching states per
    # call is the main wall-clock lever for this dispatch/DMA-latency-bound
    # kernel (weights are DMAed once per call).
    batch, state_size, action_size = 256, 8, 2
    linear_dim = (32, 32)

    key = jax.random.PRNGKey(0)
    k_param, k_x = jax.random.split(key)
    params = init_actor_params(k_param, state_size, linear_dim, action_size)
    packed = pack_actor_params(params)
    x = jax.random.normal(k_x, (batch, state_size), jnp.float32)

    act = jax.block_until_ready(actor_forward(x, packed))
    ref = actor_reference(x, params)

    # Tolerance holds with bf16 MXU inputs: the tiny (+-0.003) head weights
    # crush upstream bf16/BN error, leaving ~3e-4 worst-case on the output.
    np.testing.assert_allclose(np.asarray(act), np.asarray(ref),
                               rtol=2e-3, atol=2e-3)
    assert act.shape == (batch, action_size)
    print("KERNEL_OK")
</pallas_src>

<mosaic_0001>
module attributes {stable_mosaic.version = 11 : i64} {
  func.func @actor_kernel(%arg0: memref<256x8xf32, #tpu.memory_space<vmem>>, %arg1: memref<280x128xbf16, #tpu.memory_space<vmem>>, %arg2: memref<256x2xf32, #tpu.memory_space<vmem>>) attributes {dimension_semantics = [], scalar_prefetch = 0 : i64, scratch_operands = 0 : i64, tpu.core_type = #tpu.core_type<tc>} {
    %c0 = arith.constant 0 : index
    %c0_0 = arith.constant 0 : index
    %0 = vector.load %arg1[%c0, %c0_0] : memref<280x128xbf16, #tpu.memory_space<vmem>>, vector<8x128xbf16>
    %c16 = arith.constant 16 : index
    %c0_1 = arith.constant 0 : index
    %1 = vector.load %arg1[%c16, %c0_1] : memref<280x128xbf16, #tpu.memory_space<vmem>>, vector<128x128xbf16>
    %c144 = arith.constant 144 : index
    %c0_2 = arith.constant 0 : index
    %2 = vector.load %arg1[%c144, %c0_2] : memref<280x128xbf16, #tpu.memory_space<vmem>>, vector<128x128xbf16>
    %c272 = arith.constant 272 : index
    %c0_3 = arith.constant 0 : index
    %3 = vector.load %arg1[%c272, %c0_3] : memref<280x128xbf16, #tpu.memory_space<vmem>>, vector<1x128xbf16>
    %4 = arith.extf %3 : vector<1x128xbf16> to vector<1x128xf32>
    %c273 = arith.constant 273 : index
    %c0_4 = arith.constant 0 : index
    %5 = vector.load %arg1[%c273, %c0_4] : memref<280x128xbf16, #tpu.memory_space<vmem>>, vector<1x128xbf16>
    %6 = arith.extf %5 : vector<1x128xbf16> to vector<1x128xf32>
    %c274 = arith.constant 274 : index
    %c0_5 = arith.constant 0 : index
    %7 = vector.load %arg1[%c274, %c0_5] : memref<280x128xbf16, #tpu.memory_space<vmem>>, vector<1x128xbf16>
    %8 = arith.extf %7 : vector<1x128xbf16> to vector<1x128xf32>
    %c275 = arith.constant 275 : index
    %c0_6 = arith.constant 0 : index
    %9 = vector.load %arg1[%c275, %c0_6] : memref<280x128xbf16, #tpu.memory_space<vmem>>, vector<1x128xbf16>
    %10 = arith.extf %9 : vector<1x128xbf16> to vector<1x128xf32>
    %c276 = arith.constant 276 : index
    %c0_7 = arith.constant 0 : index
    %11 = vector.load %arg1[%c276, %c0_7] : memref<280x128xbf16, #tpu.memory_space<vmem>>, vector<1x128xbf16>
    %12 = arith.extf %11 : vector<1x128xbf16> to vector<1x128xf32>
    %c0_8 = arith.constant 0 : index
    %c0_9 = arith.constant 0 : index
    %13 = vector.load %arg0[%c0_8, %c0_9] : memref<256x8xf32, #tpu.memory_space<vmem>>, vector<256x8xf32>
    %14 = arith.truncf %13 : vector<256x8xf32> to vector<256x8xbf16>
    %cst = arith.constant dense<0.000000e+00> : vector<256x128xf32>
    %15 = tpu.matmul %14, %0, %cst {dimension_numbers = #tpu.dot_dimension_numbers<[1], [0], [0], [1], [0, 0, 1, 1], [], []>} : vector<256x8xbf16>, vector<8x128xbf16>, vector<256x128xf32> -> vector<256x128xf32>
    %16 = vector.broadcast %4 : vector<1x128xf32> to vector<256x128xf32>
    %17 = arith.addf %15, %16 : vector<256x128xf32>
    %cst_10 = arith.constant 5.000000e-01 : f32
    %18 = vector.broadcast %cst_10 : f32 to vector<256x128xf32>
    %19 = arith.mulf %18, %17 : vector<256x128xf32>
    %cst_11 = arith.constant 5.000000e-01 : f32
    %20 = vector.broadcast %cst_11 : f32 to vector<256x128xf32>
    %21 = arith.mulf %20, %17 : vector<256x128xf32>
    %22 = math.tanh %21 : vector<256x128xf32>
    %cst_12 = arith.constant 1.000000e+00 : f32
    %23 = vector.broadcast %cst_12 : f32 to vector<256x128xf32>
    %24 = arith.addf %23, %22 : vector<256x128xf32>
    %25 = arith.mulf %19, %24 : vector<256x128xf32>
    %26 = arith.mulf %25, %25 : vector<256x128xf32>
    %27 = tpu.concatenate %25, %26 in 1 : vector<256x128xf32>, vector<256x128xf32> -> vector<256x256xf32>
    %cst_13 = arith.constant dense<0.000000e+00> : vector<256xf32>
    %28 = vector.multi_reduction <add>, %27, %cst_13 [0] : vector<256x256xf32> to vector<256xf32>
    %29 = vector.shape_cast %28 : vector<256xf32> to vector<1x256xf32>
    %30 = vector.extract_strided_slice %29 {offsets = [0, 0], sizes = [1, 128], strides = [1, 1]} : vector<1x256xf32> to vector<1x128xf32>
    %cst_14 = arith.constant 3.906250e-03 : f32
    %31 = vector.broadcast %cst_14 : f32 to vector<1x128xf32>
    %32 = arith.mulf %30, %31 : vector<1x128xf32>
    %33 = vector.extract_strided_slice %29 {offsets = [0, 128], sizes = [1, 128], strides = [1, 1]} : vector<1x256xf32> to vector<1x128xf32>
    %cst_15 = arith.constant 3.906250e-03 : f32
    %34 = vector.broadcast %cst_15 : f32 to vector<1x128xf32>
    %35 = arith.mulf %33, %34 : vector<1x128xf32>
    %36 = arith.mulf %32, %32 : vector<1x128xf32>
    %37 = arith.subf %35, %36 : vector<1x128xf32>
    %cst_16 = arith.constant 0.000000e+00 : f32
    %38 = vector.broadcast %cst_16 : f32 to vector<1x128xf32>
    %39 = arith.maximumf %37, %38 : vector<1x128xf32>
    %40 = vector.broadcast %32 : vector<1x128xf32> to vector<256x128xf32>
    %41 = arith.subf %25, %40 : vector<256x128xf32>
    %cst_17 = arith.constant 9.99999974E-6 : f32
    %42 = vector.broadcast %cst_17 : f32 to vector<1x128xf32>
    %43 = arith.addf %39, %42 : vector<1x128xf32>
    %44 = math.rsqrt %43 : vector<1x128xf32>
    %45 = vector.broadcast %44 : vector<1x128xf32> to vector<256x128xf32>
    %46 = arith.mulf %41, %45 : vector<256x128xf32>
    %47 = vector.broadcast %6 : vector<1x128xf32> to vector<256x128xf32>
    %48 = arith.mulf %46, %47 : vector<256x128xf32>
    %49 = vector.broadcast %8 : vector<1x128xf32> to vector<256x128xf32>
    %50 = arith.addf %48, %49 : vector<256x128xf32>
    %51 = arith.truncf %50 : vector<256x128xf32> to vector<256x128xbf16>
    %cst_18 = arith.constant dense<0.000000e+00> : vector<256x128xf32>
    %52 = tpu.matmul %51, %1, %cst_18 {dimension_numbers = #tpu.dot_dimension_numbers<[1], [0], [0], [1], [0, 0, 1, 1], [], []>} : vector<256x128xbf16>, vector<128x128xbf16>, vector<256x128xf32> -> vector<256x128xf32>
    %53 = vector.broadcast %10 : vector<1x128xf32> to vector<256x128xf32>
    %54 = arith.addf %52, %53 : vector<256x128xf32>
    %cst_19 = arith.constant 5.000000e-01 : f32
    %55 = vector.broadcast %cst_19 : f32 to vector<256x128xf32>
    %56 = arith.mulf %55, %54 : vector<256x128xf32>
    %cst_20 = arith.constant 5.000000e-01 : f32
    %57 = vector.broadcast %cst_20 : f32 to vector<256x128xf32>
    %58 = arith.mulf %57, %54 : vector<256x128xf32>
    %59 = math.tanh %58 : vector<256x128xf32>
    %cst_21 = arith.constant 1.000000e+00 : f32
    %60 = vector.broadcast %cst_21 : f32 to vector<256x128xf32>
    %61 = arith.addf %60, %59 : vector<256x128xf32>
    %62 = arith.mulf %56, %61 : vector<256x128xf32>
    %63 = arith.truncf %62 : vector<256x128xf32> to vector<256x128xbf16>
    %cst_22 = arith.constant dense<0.000000e+00> : vector<256x128xf32>
    %64 = tpu.matmul %63, %2, %cst_22 {dimension_numbers = #tpu.dot_dimension_numbers<[1], [0], [0], [1], [0, 0, 1, 1], [], []>} : vector<256x128xbf16>, vector<128x128xbf16>, vector<256x128xf32> -> vector<256x128xf32>
    %65 = vector.broadcast %12 : vector<1x128xf32> to vector<256x128xf32>
    %66 = arith.addf %64, %65 : vector<256x128xf32>
    %67 = math.tanh %66 : vector<256x128xf32>
    %68 = vector.extract_strided_slice %67 {offsets = [0, 0], sizes = [256, 2], strides = [1, 1]} : vector<256x128xf32> to vector<256x2xf32>
    %c0_23 = arith.constant 0 : index
    %c0_24 = arith.constant 0 : index
    %69 = vector.load %arg2[%c0_23, %c0_24] : memref<256x2xf32, #tpu.memory_space<vmem>>, vector<256x2xf32>
    tpu.vector_store %arg2[%c0_23, %c0_24], %68 {strides = array<i32>} : memref<256x2xf32, #tpu.memory_space<vmem>>, vector<256x2xf32>,
    return
  }
}

</mosaic_0001>

<llo_original>
// kernel: tpu_custom_call.1
$region0: #{tpu_custom_call.1}
  #allocation0 [shape = 'u32[]', space=smem, size = 0x4, offset = 0x4, fixed_abs, tag = 'smem constant byte address 0x4 - core index']
  #allocation1 [shape = 'u32[144,128]{1,0:T(1,128)}', space=vmem, size = 0x12000, scoped, tag = 'internal scratch']
  %s0 = inlined_call_operand.vmem [shape: f32[256,8], index: 0, kind: input, shape index: {}]
  %s1 = inlined_call_operand.vmem [shape: bf16[280,128], index: 1, kind: input, shape index: {}]
  %s2 = inlined_call_operand.vmem [shape: f32[256,2], index: 2, kind: output, shape index: {}]
  %s3 = sld [smem:[#allocation0]]
  $region18: #{tpu_custom_call.1} parent=0
    _
  %s5 = ssub.s32 1, %s3
  %s6 = scalar_select 0, %s5, %s3
  // Predicated region
  $region2: #{tpu_custom_call.1} parent=0 // pred_check
    _
  $region3: #{tpu_custom_call.1} parent=0 // pred_check_branch
    %8 = sbr.rel (0) target = $region5
  $region4: #{tpu_custom_call.1} parent=0 // pred_region
    _
  $region5: #{tpu_custom_call.1} parent=0 // pred_fallthru
    _
  // Predicated region
  $region6: #{tpu_custom_call.1} parent=0 // pred_check
    _
  $region7: #{tpu_custom_call.1} parent=0 // pred_check_branch
    %10 = sbr.rel (0) target = $region9
  $region8: #{tpu_custom_call.1} parent=0 // pred_region
    _
  $region9: #{tpu_custom_call.1} parent=0 // pred_fallthru
    _
  %v12 = vld [vmem:[%s1] sm:$0xf]
  %v13 = vld [vmem:[%s1 + $0x8] sm:$0xf]
  %v14 = vld [vmem:[%s1 + $0xc] sm:$0xf]
  %v15 = vld [vmem:[%s1 + $0x10] sm:$0xf]
  %v16 = vld [vmem:[%s1 + $0x14] sm:$0xf]
  %v17 = vld [vmem:[%s1 + $0x18] sm:$0xf]
  %v18 = vld [vmem:[%s1 + $0x1c] sm:$0xf]
  %v19 = vld [vmem:[%s1 + $0x20] sm:$0xf]
  %v20 = vld [vmem:[%s1 + $0x24] sm:$0xf]
  %v21 = vld [vmem:[%s1 + $0x28] sm:$0xf]
  %v22 = vld [vmem:[%s1 + $0x2c] sm:$0xf]
  %v23 = vld [vmem:[%s1 + $0x30] sm:$0xf]
  %v24 = vld [vmem:[%s1 + $0x34] sm:$0xf]
  %v25 = vld [vmem:[%s1 + $0x38] sm:$0xf]
  %v26 = vld [vmem:[%s1 + $0x3c] sm:$0xf]
  %v27 = vld [vmem:[%s1 + $0x40] sm:$0xf]
  %v28 = vld [vmem:[%s1 + $0x44] sm:$0xf]
  %v29 = vld [vmem:[%s1 + $0x48] sm:$0xf]
  %v30 = vld [vmem:[%s1 + $0x4c] sm:$0xf]
  %v31 = vld [vmem:[%s1 + $0x50] sm:$0xf]
  %v32 = vld [vmem:[%s1 + $0x54] sm:$0xf]
  %v33 = vld [vmem:[%s1 + $0x58] sm:$0xf]
  %v34 = vld [vmem:[%s1 + $0x5c] sm:$0xf]
  %v35 = vld [vmem:[%s1 + $0x60] sm:$0xf]
  %v36 = vld [vmem:[%s1 + $0x64] sm:$0xf]
  %v37 = vld [vmem:[%s1 + $0x68] sm:$0xf]
  %v38 = vld [vmem:[%s1 + $0x6c] sm:$0xf]
  %v39 = vld [vmem:[%s1 + $0x70] sm:$0xf]
  %v40 = vld [vmem:[%s1 + $0x74] sm:$0xf]
  %v41 = vld [vmem:[%s1 + $0x78] sm:$0xf]
  %v42 = vld [vmem:[%s1 + $0x7c] sm:$0xf]
  %v43 = vld [vmem:[%s1 + $0x80] sm:$0xf]
  %v44 = vld [vmem:[%s1 + $0x84] sm:$0xf]
  %v45 = vld [vmem:[%s1 + $0x88] sm:$0x1]
  %v46 = vunpack.c.l.bf16 %v45
  %v47 = vld [vmem:[%s1 + $0x88] sm:$0x2]
  %v48 = vunpack.c.l.bf16 %v47
  %v49 = vld [vmem:[%s1 + $0x88] sm:$0x4]
  %v50 = vunpack.c.l.bf16 %v49
  %v51 = vld [vmem:[%s0] sm:$0xff]
  %v52 = vld [vmem:[%s0 + $0x8] sm:$0xff]
  %v53 = vld [vmem:[%s0 + $0x10] sm:$0xff]
  %v54 = vld [vmem:[%s0 + $0x18] sm:$0xff]
  %v55 = vld [vmem:[%s0 + $0x20] sm:$0xff]
  %v56 = vld [vmem:[%s0 + $0x28] sm:$0xff]
  %v57 = vld [vmem:[%s0 + $0x30] sm:$0xff]
  %v58 = vld [vmem:[%s0 + $0x38] sm:$0xff]
  %v59 = vld [vmem:[%s0 + $0x40] sm:$0xff]
  %v60 = vld [vmem:[%s0 + $0x48] sm:$0xff]
  %v61 = vld [vmem:[%s0 + $0x50] sm:$0xff]
  %v62 = vld [vmem:[%s0 + $0x58] sm:$0xff]
  %v63 = vld [vmem:[%s0 + $0x60] sm:$0xff]
  %v64 = vld [vmem:[%s0 + $0x68] sm:$0xff]
  %v65 = vld [vmem:[%s0 + $0x70] sm:$0xff]
  %v66 = vld [vmem:[%s0 + $0x78] sm:$0xff]
  %v67 = vld [vmem:[%s0 + $0x80] sm:$0xff]
  %v68 = vld [vmem:[%s0 + $0x88] sm:$0xff]
  %v69 = vld [vmem:[%s0 + $0x90] sm:$0xff]
  %v70 = vld [vmem:[%s0 + $0x98] sm:$0xff]
  %v71 = vld [vmem:[%s0 + $0xa0] sm:$0xff]
  %v72 = vld [vmem:[%s0 + $0xa8] sm:$0xff]
  %v73 = vld [vmem:[%s0 + $0xb0] sm:$0xff]
  %v74 = vld [vmem:[%s0 + $0xb8] sm:$0xff]
  %v75 = vld [vmem:[%s0 + $0xc0] sm:$0xff]
  %v76 = vld [vmem:[%s0 + $0xc8] sm:$0xff]
  %v77 = vld [vmem:[%s0 + $0xd0] sm:$0xff]
  %v78 = vld [vmem:[%s0 + $0xd8] sm:$0xff]
  %v79 = vld [vmem:[%s0 + $0xe0] sm:$0xff]
  %v80 = vld [vmem:[%s0 + $0xe8] sm:$0xff]
  %v81 = vld [vmem:[%s0 + $0xf0] sm:$0xff]
  %v82 = vld [vmem:[%s0 + $0xf8] sm:$0xff]
  %v83 = vpack.c.bf16 %v52, %v51
  %v84 = vpack.c.bf16 %v54, %v53
  %v85 = vpack.c.bf16 %v56, %v55
  %v86 = vpack.c.bf16 %v58, %v57
  %v87 = vpack.c.bf16 %v60, %v59
  %v88 = vpack.c.bf16 %v62, %v61
  %v89 = vpack.c.bf16 %v64, %v63
  %v90 = vpack.c.bf16 %v66, %v65
  %v91 = vpack.c.bf16 %v68, %v67
  %v92 = vpack.c.bf16 %v70, %v69
  %v93 = vpack.c.bf16 %v72, %v71
  %v94 = vpack.c.bf16 %v74, %v73
  %v95 = vpack.c.bf16 %v76, %v75
  %v96 = vpack.c.bf16 %v78, %v77
  %v97 = vpack.c.bf16 %v80, %v79
  %v98 = vpack.c.bf16 %v82, %v81
  %v99 = vlaneseq
  %v100 = vshrl.u32 %v99, 7
  %v101 = vsub.s32 0, %v100
  %v102 = vrot.slane %v46, %v101
  %vm103 = vcmask 64512
  %v105 = vsel %vm103, %v83, 0
  %v108 = vsel %vm103, %v84, 0
  %v111 = vsel %vm103, %v85, 0
  %v114 = vsel %vm103, %v86, 0
  %v117 = vsel %vm103, %v87, 0
  %v120 = vsel %vm103, %v88, 0
  %v123 = vsel %vm103, %v89, 0
  %v126 = vsel %vm103, %v90, 0
  %v129 = vsel %vm103, %v91, 0
  %v132 = vsel %vm103, %v92, 0
  %v135 = vsel %vm103, %v93, 0
  %v138 = vsel %vm103, %v94, 0
  %v141 = vsel %vm103, %v95, 0
  %v144 = vsel %vm103, %v96, 0
  %v147 = vsel %vm103, %v97, 0
  %v150 = vsel %vm103, %v98, 0
  %vm152 = vcmask 1043456
  %v154 = vsel %vm152, %v12, 0
  %156 = vmatprep.subr.bf16.mxu0 0
  %157 = vmatpush1.bf16.msra.mxu0 %v154
  %158 = vmatprep.subr.bf16.mxu0 0
  %159 = vmatpush1.bf16.msra.mxu0 0
  %160 = vmatprep.subr.bf16.mxu0 0
  %161 = vmatpush1.bf16.msra.mxu0 0
  %162 = vmatprep.subr.bf16.mxu0 0
  %163 = vmatpush1.bf16.msra.mxu0 0
  %164 = vmatprep.subr.bf16.mxu0 0
  %165 = vmatpush1.bf16.msra.mxu0 0
  %166 = vmatprep.subr.bf16.mxu0 0
  %167 = vmatpush1.bf16.msra.mxu0 0
  %168 = vmatprep.subr.bf16.mxu0 0
  %169 = vmatpush1.bf16.msra.mxu0 0
  %170 = vmatprep.subr.bf16.mxu0 0
  %171 = vmatpush1.bf16.msra.mxu0 0
  %172 = vmatprep.subr.bf16.mxu0 0
  %173 = vmatpush1.bf16.msra.mxu0 0
  %174 = vmatprep.subr.bf16.mxu0 0
  %175 = vmatpush1.bf16.msra.mxu0 0
  %176 = vmatprep.subr.bf16.mxu0 0
  %177 = vmatpush1.bf16.msra.mxu0 0
  %178 = vmatprep.subr.bf16.mxu0 0
  %179 = vmatpush1.bf16.msra.mxu0 0
  %180 = vmatprep.subr.bf16.mxu0 0
  %181 = vmatpush1.bf16.msra.mxu0 0
  %182 = vmatprep.subr.bf16.mxu0 0
  %183 = vmatpush1.bf16.msra.mxu0 0
  %184 = vmatprep.subr.bf16.mxu0 0
  %185 = vmatpush1.bf16.msra.mxu0 0
  %186 = vmatprep.subr.bf16.mxu0 0
  %187 = vmatpush1.bf16.msra.mxu0 0
  %188 = vmatprep.mubr.bf16.mxu0 0
  %189 = vmatmul.mubr.bf16.gmra.mrb[0].mxu0 %v105
  %v190 = vpop.f32.mrb[0].mxu0
  %v191 = vadd.f32 %v102, %v190
  %v192 = vpop.f32.mrb[0].mxu0
  %v193 = vpop.f32.mrb[0].mxu0
  %v194 = vadd.f32 %v102, %v193
  %v195 = vpop.f32.mrb[0].mxu0
  %196 = vmatprep.mubr.bf16.mxu0 0
  %197 = vmatmul.mubr.bf16.gmra.mrb[0].mxu0 %v108
  %v198 = vpop.f32.mrb[0].mxu0
  %v199 = vadd.f32 %v102, %v198
  %v200 = vpop.f32.mrb[0].mxu0
  %v201 = vpop.f32.mrb[0].mxu0
  %v202 = vadd.f32 %v102, %v201
  %v203 = vpop.f32.mrb[0].mxu0
  %204 = vmatprep.mubr.bf16.mxu0 0
  %205 = vmatmul.mubr.bf16.gmra.mrb[0].mxu0 %v111
  %v206 = vpop.f32.mrb[0].mxu0
  %v207 = vadd.f32 %v102, %v206
  %v208 = vpop.f32.mrb[0].mxu0
  %v209 = vpop.f32.mrb[0].mxu0
  %v210 = vadd.f32 %v102, %v209
  %v211 = vpop.f32.mrb[0].mxu0
  %212 = vmatprep.mubr.bf16.mxu0 0
  %213 = vmatmul.mubr.bf16.gmra.mrb[0].mxu0 %v114
  %v214 = vpop.f32.mrb[0].mxu0
  %v215 = vadd.f32 %v102, %v214
  %v216 = vpop.f32.mrb[0].mxu0
  %v217 = vpop.f32.mrb[0].mxu0
  %v218 = vadd.f32 %v102, %v217
  %v219 = vpop.f32.mrb[0].mxu0
  %220 = vmatprep.mubr.bf16.mxu0 0
  %221 = vmatmul.mubr.bf16.gmra.mrb[0].mxu0 %v117
  %v222 = vpop.f32.mrb[0].mxu0
  %v223 = vadd.f32 %v102, %v222
  %v224 = vpop.f32.mrb[0].mxu0
  %v225 = vpop.f32.mrb[0].mxu0
  %v226 = vadd.f32 %v102, %v225
  %v227 = vpop.f32.mrb[0].mxu0
  %228 = vmatprep.mubr.bf16.mxu0 0
  %229 = vmatmul.mubr.bf16.gmra.mrb[0].mxu0 %v120
  %v230 = vpop.f32.mrb[0].mxu0
  %v231 = vadd.f32 %v102, %v230
  %v232 = vpop.f32.mrb[0].mxu0
  %v233 = vpop.f32.mrb[0].mxu0
  %v234 = vadd.f32 %v102, %v233
  %v235 = vpop.f32.mrb[0].mxu0
  %236 = vmatprep.mubr.bf16.mxu0 0
  %237 = vmatmul.mubr.bf16.gmra.mrb[0].mxu0 %v123
  %v238 = vpop.f32.mrb[0].mxu0
  %v239 = vadd.f32 %v102, %v238
  %v240 = vpop.f32.mrb[0].mxu0
  %v241 = vpop.f32.mrb[0].mxu0
  %v242 = vadd.f32 %v102, %v241
  %v243 = vpop.f32.mrb[0].mxu0
  %244 = vmatprep.mubr.bf16.mxu0 0
  %245 = vmatmul.mubr.bf16.gmra.mrb[0].mxu0 %v126
  %v246 = vpop.f32.mrb[0].mxu0
  %v247 = vadd.f32 %v102, %v246
  %v248 = vpop.f32.mrb[0].mxu0
  %v249 = vpop.f32.mrb[0].mxu0
  %v250 = vadd.f32 %v102, %v249
  %v251 = vpop.f32.mrb[0].mxu0
  %252 = vmatprep.mubr.bf16.mxu0 0
  %253 = vmatmul.mubr.bf16.gmra.mrb[0].mxu0 %v129
  %v254 = vpop.f32.mrb[0].mxu0
  %v255 = vadd.f32 %v102, %v254
  %v256 = vpop.f32.mrb[0].mxu0
  %v257 = vpop.f32.mrb[0].mxu0
  %v258 = vadd.f32 %v102, %v257
  %v259 = vpop.f32.mrb[0].mxu0
  %260 = vmatprep.mubr.bf16.mxu0 0
  %261 = vmatmul.mubr.bf16.gmra.mrb[0].mxu0 %v132
  %v262 = vpop.f32.mrb[0].mxu0
  %v263 = vadd.f32 %v102, %v262
  %v264 = vpop.f32.mrb[0].mxu0
  %v265 = vpop.f32.mrb[0].mxu0
  %v266 = vadd.f32 %v102, %v265
  %v267 = vpop.f32.mrb[0].mxu0
  %268 = vmatprep.mubr.bf16.mxu0 0
  %269 = vmatmul.mubr.bf16.gmra.mrb[0].mxu0 %v135
  %v270 = vpop.f32.mrb[0].mxu0
  %v271 = vadd.f32 %v102, %v270
  %v272 = vpop.f32.mrb[0].mxu0
  %v273 = vpop.f32.mrb[0].mxu0
  %v274 = vadd.f32 %v102, %v273
  %v275 = vpop.f32.mrb[0].mxu0
  %276 = vmatprep.mubr.bf16.mxu0 0
  %277 = vmatmul.mubr.bf16.gmra.mrb[0].mxu0 %v138
  %v278 = vpop.f32.mrb[0].mxu0
  %v279 = vadd.f32 %v102, %v278
  %v280 = vpop.f32.mrb[0].mxu0
  %v281 = vpop.f32.mrb[0].mxu0
  %v282 = vadd.f32 %v102, %v281
  %v283 = vpop.f32.mrb[0].mxu0
  %284 = vmatprep.mubr.bf16.mxu0 0
  %285 = vmatmul.mubr.bf16.gmra.mrb[0].mxu0 %v141
  %v286 = vpop.f32.mrb[0].mxu0
  %v287 = vadd.f32 %v102, %v286
  %v288 = vpop.f32.mrb[0].mxu0
  %v289 = vpop.f32.mrb[0].mxu0
  %v290 = vadd.f32 %v102, %v289
  %v291 = vpop.f32.mrb[0].mxu0
  %292 = vmatprep.mubr.bf16.mxu0 0
  %293 = vmatmul.mubr.bf16.gmra.mrb[0].mxu0 %v144
  %v294 = vpop.f32.mrb[0].mxu0
  %v295 = vadd.f32 %v102, %v294
  %v296 = vpop.f32.mrb[0].mxu0
  %v297 = vpop.f32.mrb[0].mxu0
  %v298 = vadd.f32 %v102, %v297
  %v299 = vpop.f32.mrb[0].mxu0
  %300 = vmatprep.mubr.bf16.mxu0 0
  %301 = vmatmul.mubr.bf16.gmra.mrb[0].mxu0 %v147
  %v302 = vpop.f32.mrb[0].mxu0
  %v303 = vadd.f32 %v102, %v302
  %v304 = vpop.f32.mrb[0].mxu0
  %v305 = vpop.f32.mrb[0].mxu0
  %v306 = vadd.f32 %v102, %v305
  %v307 = vpop.f32.mrb[0].mxu0
  %308 = vmatprep.mubr.bf16.mxu0 0
  %309 = vmatmul.mubr.bf16.gmra.mrb[0].mxu0 %v150
  %v310 = vpop.f32.mrb[0].mxu0
  %v311 = vadd.f32 %v102, %v310
  %v312 = vpop.f32.mrb[0].mxu0
  %v313 = vpop.f32.mrb[0].mxu0
  %v314 = vadd.f32 %v102, %v313
  %v315 = vpop.f32.mrb[0].mxu0
  %316 = vdwg.mxu0
  %v317 = vmul.f32 %v191, 0.5
  %v318 = vmul.f32 %v194, 0.5
  %v319 = vmul.f32 %v199, 0.5
  %v320 = vmul.f32 %v202, 0.5
  %v321 = vmul.f32 %v207, 0.5
  %v322 = vmul.f32 %v210, 0.5
  %v323 = vmul.f32 %v215, 0.5
  %v324 = vmul.f32 %v218, 0.5
  %v325 = vmul.f32 %v223, 0.5
  %v326 = vmul.f32 %v226, 0.5
  %v327 = vmul.f32 %v231, 0.5
  %v328 = vmul.f32 %v234, 0.5
  %v329 = vmul.f32 %v239, 0.5
  %v330 = vmul.f32 %v242, 0.5
  %v331 = vmul.f32 %v247, 0.5
  %v332 = vmul.f32 %v250, 0.5
  %v333 = vmul.f32 %v255, 0.5
  %v334 = vmul.f32 %v258, 0.5
  %v335 = vmul.f32 %v263, 0.5
  %v336 = vmul.f32 %v266, 0.5
  %v337 = vmul.f32 %v271, 0.5
  %v338 = vmul.f32 %v274, 0.5
  %v339 = vmul.f32 %v279, 0.5
  %v340 = vmul.f32 %v282, 0.5
  %v341 = vmul.f32 %v287, 0.5
  %v342 = vmul.f32 %v290, 0.5
  %v343 = vmul.f32 %v295, 0.5
  %v344 = vmul.f32 %v298, 0.5
  %v345 = vmul.f32 %v303, 0.5
  %v346 = vmul.f32 %v306, 0.5
  %v347 = vmul.f32 %v311, 0.5
  %v348 = vmul.f32 %v314, 0.5
  %v349 = vtanh.pop %v317
  %v350 = vtanh.pop %v318
  %v351 = vtanh.pop %v319
  %v352 = vtanh.pop %v320
  %v353 = vtanh.pop %v321
  %v354 = vtanh.pop %v322
  %v355 = vtanh.pop %v323
  %v356 = vtanh.pop %v324
  %v357 = vtanh.pop %v325
  %v358 = vtanh.pop %v326
  %v359 = vtanh.pop %v327
  %v360 = vtanh.pop %v328
  %v361 = vtanh.pop %v329
  %v362 = vtanh.pop %v330
  %v363 = vtanh.pop %v331
  %v364 = vtanh.pop %v332
  %v365 = vtanh.pop %v333
  %v366 = vtanh.pop %v334
  %v367 = vtanh.pop %v335
  %v368 = vtanh.pop %v336
  %v369 = vtanh.pop %v337
  %v370 = vtanh.pop %v338
  %v371 = vtanh.pop %v339
  %v372 = vtanh.pop %v340
  %v373 = vtanh.pop %v341
  %v374 = vtanh.pop %v342
  %v375 = vtanh.pop %v343
  %v376 = vtanh.pop %v344
  %v377 = vtanh.pop %v345
  %v378 = vtanh.pop %v346
  %v379 = vtanh.pop %v347
  %v380 = vtanh.pop %v348
  %v381 = vadd.f32 %v349, 1.0
  %v382 = vadd.f32 %v350, 1.0
  %v383 = vadd.f32 %v351, 1.0
  %v384 = vadd.f32 %v352, 1.0
  %v385 = vadd.f32 %v353, 1.0
  %v386 = vadd.f32 %v354, 1.0
  %v387 = vadd.f32 %v355, 1.0
  %v388 = vadd.f32 %v356, 1.0
  %v389 = vadd.f32 %v357, 1.0
  %v390 = vadd.f32 %v358, 1.0
  %v391 = vadd.f32 %v359, 1.0
  %v392 = vadd.f32 %v360, 1.0
  %v393 = vadd.f32 %v361, 1.0
  %v394 = vadd.f32 %v362, 1.0
  %v395 = vadd.f32 %v363, 1.0
  %v396 = vadd.f32 %v364, 1.0
  %v397 = vadd.f32 %v365, 1.0
  %v398 = vadd.f32 %v366, 1.0
  %v399 = vadd.f32 %v367, 1.0
  %v400 = vadd.f32 %v368, 1.0
  %v401 = vadd.f32 %v369, 1.0
  %v402 = vadd.f32 %v370, 1.0
  %v403 = vadd.f32 %v371, 1.0
  %v404 = vadd.f32 %v372, 1.0
  %v405 = vadd.f32 %v373, 1.0
  %v406 = vadd.f32 %v374, 1.0
  %v407 = vadd.f32 %v375, 1.0
  %v408 = vadd.f32 %v376, 1.0
  %v409 = vadd.f32 %v377, 1.0
  %v410 = vadd.f32 %v378, 1.0
  %v411 = vadd.f32 %v379, 1.0
  %v412 = vadd.f32 %v380, 1.0
  %v413 = vmul.f32 %v317, %v381
  %v414 = vmul.f32 %v318, %v382
  %v415 = vmul.f32 %v319, %v383
  %v416 = vmul.f32 %v320, %v384
  %v417 = vmul.f32 %v321, %v385
  %v418 = vmul.f32 %v322, %v386
  %v419 = vmul.f32 %v323, %v387
  %v420 = vmul.f32 %v324, %v388
  %v421 = vmul.f32 %v325, %v389
  %v422 = vmul.f32 %v326, %v390
  %v423 = vmul.f32 %v327, %v391
  %v424 = vmul.f32 %v328, %v392
  %v425 = vmul.f32 %v329, %v393
  %v426 = vmul.f32 %v330, %v394
  %v427 = vmul.f32 %v331, %v395
  %v428 = vmul.f32 %v332, %v396
  %v429 = vmul.f32 %v333, %v397
  %v430 = vmul.f32 %v334, %v398
  %v431 = vmul.f32 %v335, %v399
  %v432 = vmul.f32 %v336, %v400
  %v433 = vmul.f32 %v337, %v401
  %v434 = vmul.f32 %v338, %v402
  %v435 = vmul.f32 %v339, %v403
  %v436 = vmul.f32 %v340, %v404
  %v437 = vmul.f32 %v341, %v405
  %v438 = vmul.f32 %v342, %v406
  %v439 = vmul.f32 %v343, %v407
  %v440 = vmul.f32 %v344, %v408
  %v441 = vmul.f32 %v345, %v409
  %v442 = vmul.f32 %v346, %v410
  %v443 = vmul.f32 %v347, %v411
  %v444 = vmul.f32 %v348, %v412
  %v445 = vmul.f32 %v413, %v413
  %v446 = vmul.f32 %v414, %v414
  %v447 = vmul.f32 %v415, %v415
  %v448 = vmul.f32 %v416, %v416
  %v449 = vmul.f32 %v417, %v417
  %v450 = vmul.f32 %v418, %v418
  %v451 = vmul.f32 %v419, %v419
  %v452 = vmul.f32 %v420, %v420
  %v453 = vmul.f32 %v421, %v421
  %v454 = vmul.f32 %v422, %v422
  %v455 = vmul.f32 %v423, %v423
  %v456 = vmul.f32 %v424, %v424
  %v457 = vmul.f32 %v425, %v425
  %v458 = vmul.f32 %v426, %v426
  %v459 = vmul.f32 %v427, %v427
  %v460 = vmul.f32 %v428, %v428
  %v461 = vmul.f32 %v429, %v429
  %v462 = vmul.f32 %v430, %v430
  %v463 = vmul.f32 %v431, %v431
  %v464 = vmul.f32 %v432, %v432
  %v465 = vmul.f32 %v433, %v433
  %v466 = vmul.f32 %v434, %v434
  %v467 = vmul.f32 %v435, %v435
  %v468 = vmul.f32 %v436, %v436
  %v469 = vmul.f32 %v437, %v437
  %v470 = vmul.f32 %v438, %v438
  %v471 = vmul.f32 %v439, %v439
  %v472 = vmul.f32 %v440, %v440
  %v473 = vmul.f32 %v441, %v441
  %v474 = vmul.f32 %v442, %v442
  %v475 = vmul.f32 %v443, %v443
  %v476 = vmul.f32 %v444, %v444
  %v477 = vadd.f32 %v413, %v414
  %v478 = vadd.f32 %v477, %v415
  %v479 = vadd.f32 %v478, %v416
  %v480 = vadd.f32 %v479, %v417
  %v481 = vadd.f32 %v480, %v418
  %v482 = vadd.f32 %v481, %v419
  %v483 = vadd.f32 %v482, %v420
  %v484 = vadd.f32 %v483, %v421
  %v485 = vadd.f32 %v484, %v422
  %v486 = vadd.f32 %v485, %v423
  %v487 = vadd.f32 %v486, %v424
  %v488 = vadd.f32 %v487, %v425
  %v489 = vadd.f32 %v488, %v426
  %v490 = vadd.f32 %v489, %v427
  %v491 = vadd.f32 %v490, %v428
  %v492 = vadd.f32 %v491, %v429
  %v493 = vadd.f32 %v492, %v430
  %v494 = vadd.f32 %v493, %v431
  %v495 = vadd.f32 %v494, %v432
  %v496 = vadd.f32 %v495, %v433
  %v497 = vadd.f32 %v496, %v434
  %v498 = vadd.f32 %v497, %v435
  %v499 = vadd.f32 %v498, %v436
  %v500 = vadd.f32 %v499, %v437
  %v501 = vadd.f32 %v500, %v438
  %v502 = vadd.f32 %v501, %v439
  %v503 = vadd.f32 %v502, %v440
  %v504 = vadd.f32 %v503, %v441
  %v505 = vadd.f32 %v504, %v442
  %v506 = vadd.f32 %v505, %v443
  %v507 = vadd.f32 %v506, %v444
  %v508 = vrot.slane %v507, 4
  %v509 = vadd.f32 %v507, %v508
  %v510 = vrot.slane %v509, 2
  %v511 = vadd.f32 %v509, %v510
  %v512 = vrot.slane %v511, 1
  %v513 = vadd.f32 %v511, %v512
  %v514 = vadd.f32 %v445, %v446
  %v515 = vadd.f32 %v514, %v447
  %v516 = vadd.f32 %v515, %v448
  %v517 = vadd.f32 %v516, %v449
  %v518 = vadd.f32 %v517, %v450
  %v519 = vadd.f32 %v518, %v451
  %v520 = vadd.f32 %v519, %v452
  %v521 = vadd.f32 %v520, %v453
  %v522 = vadd.f32 %v521, %v454
  %v523 = vadd.f32 %v522, %v455
  %v524 = vadd.f32 %v523, %v456
  %v525 = vadd.f32 %v524, %v457
  %v526 = vadd.f32 %v525, %v458
  %v527 = vadd.f32 %v526, %v459
  %v528 = vadd.f32 %v527, %v460
  %v529 = vadd.f32 %v528, %v461
  %v530 = vadd.f32 %v529, %v462
  %v531 = vadd.f32 %v530, %v463
  %v532 = vadd.f32 %v531, %v464
  %v533 = vadd.f32 %v532, %v465
  %v534 = vadd.f32 %v533, %v466
  %v535 = vadd.f32 %v534, %v467
  %v536 = vadd.f32 %v535, %v468
  %v537 = vadd.f32 %v536, %v469
  %v538 = vadd.f32 %v537, %v470
  %v539 = vadd.f32 %v538, %v471
  %v540 = vadd.f32 %v539, %v472
  %v541 = vadd.f32 %v540, %v473
  %v542 = vadd.f32 %v541, %v474
  %v543 = vadd.f32 %v542, %v475
  %v544 = vadd.f32 %v543, %v476
  %v545 = vrot.slane %v544, 4
  %v546 = vadd.f32 %v544, %v545
  %v547 = vrot.slane %v546, 2
  %v548 = vadd.f32 %v546, %v547
  %v549 = vrot.slane %v548, 1
  %v550 = vadd.f32 %v548, %v549
  %v551 = vmul.f32 %v513, 0.00390625
  %v552 = vmul.f32 %v550, 0.00390625
  %v553 = vmul.f32 %v551, %v551
  %v554 = vsub.f32 %v552, %v553
  %v555 = vmax.f32 %v554, 0.0
  %v556 = vsub.f32 %v413, %v551
  %v557 = vsub.f32 %v414, %v551
  %v558 = vsub.f32 %v415, %v551
  %v559 = vsub.f32 %v416, %v551
  %v560 = vsub.f32 %v417, %v551
  %v561 = vsub.f32 %v418, %v551
  %v562 = vsub.f32 %v419, %v551
  %v563 = vsub.f32 %v420, %v551
  %v564 = vsub.f32 %v421, %v551
  %v565 = vsub.f32 %v422, %v551
  %v566 = vsub.f32 %v423, %v551
  %v567 = vsub.f32 %v424, %v551
  %v568 = vsub.f32 %v425, %v551
  %v569 = vsub.f32 %v426, %v551
  %v570 = vsub.f32 %v427, %v551
  %v571 = vsub.f32 %v428, %v551
  %v572 = vsub.f32 %v429, %v551
  %v573 = vsub.f32 %v430, %v551
  %v574 = vsub.f32 %v431, %v551
  %v575 = vsub.f32 %v432, %v551
  %v576 = vsub.f32 %v433, %v551
  %v577 = vsub.f32 %v434, %v551
  %v578 = vsub.f32 %v435, %v551
  %v579 = vsub.f32 %v436, %v551
  %v580 = vsub.f32 %v437, %v551
  %v581 = vsub.f32 %v438, %v551
  %v582 = vsub.f32 %v439, %v551
  %v583 = vsub.f32 %v440, %v551
  %v584 = vsub.f32 %v441, %v551
  %v585 = vsub.f32 %v442, %v551
  %v586 = vsub.f32 %v443, %v551
  %v587 = vsub.f32 %v444, %v551
  %v588 = vadd.f32 %v555, 1e-05
  %v589 = vrsqrt.pop %v588
  %v590 = vmul.f32 %v556, %v589
  %v591 = vmul.f32 %v557, %v589
  %v592 = vmul.f32 %v558, %v589
  %v593 = vmul.f32 %v559, %v589
  %v594 = vmul.f32 %v560, %v589
  %v595 = vmul.f32 %v561, %v589
  %v596 = vmul.f32 %v562, %v589
  %v597 = vmul.f32 %v563, %v589
  %v598 = vmul.f32 %v564, %v589
  %v599 = vmul.f32 %v565, %v589
  %v600 = vmul.f32 %v566, %v589
  %v601 = vmul.f32 %v567, %v589
  %v602 = vmul.f32 %v568, %v589
  %v603 = vmul.f32 %v569, %v589
  %v604 = vmul.f32 %v570, %v589
  %v605 = vmul.f32 %v571, %v589
  %v606 = vmul.f32 %v572, %v589
  %v607 = vmul.f32 %v573, %v589
  %v608 = vmul.f32 %v574, %v589
  %v609 = vmul.f32 %v575, %v589
  %v610 = vmul.f32 %v576, %v589
  %v611 = vmul.f32 %v577, %v589
  %v612 = vmul.f32 %v578, %v589
  %v613 = vmul.f32 %v579, %v589
  %v614 = vmul.f32 %v580, %v589
  %v615 = vmul.f32 %v581, %v589
  %v616 = vmul.f32 %v582, %v589
  %v617 = vmul.f32 %v583, %v589
  %v618 = vmul.f32 %v584, %v589
  %v619 = vmul.f32 %v585, %v589
  %v620 = vmul.f32 %v586, %v589
  %v621 = vmul.f32 %v587, %v589
  %v622 = vlaneseq
  %v623 = vshrl.u32 %v622, 7
  %v624 = vsub.s32 1, %v623
  %v625 = vrot.slane %v46, %v624
  %v626 = vmul.f32 %v590, %v625
  %v627 = vmul.f32 %v591, %v625
  %v628 = vmul.f32 %v592, %v625
  %v629 = vmul.f32 %v593, %v625
  %v630 = vmul.f32 %v594, %v625
  %v631 = vmul.f32 %v595, %v625
  %v632 = vmul.f32 %v596, %v625
  %v633 = vmul.f32 %v597, %v625
  %v634 = vmul.f32 %v598, %v625
  %v635 = vmul.f32 %v599, %v625
  %v636 = vmul.f32 %v600, %v625
  %v637 = vmul.f32 %v601, %v625
  %v638 = vmul.f32 %v602, %v625
  %v639 = vmul.f32 %v603, %v625
  %v640 = vmul.f32 %v604, %v625
  %v641 = vmul.f32 %v605, %v625
  %v642 = vmul.f32 %v606, %v625
  %v643 = vmul.f32 %v607, %v625
  %v644 = vmul.f32 %v608, %v625
  %v645 = vmul.f32 %v609, %v625
  %v646 = vmul.f32 %v610, %v625
  %v647 = vmul.f32 %v611, %v625
  %v648 = vmul.f32 %v612, %v625
  %v649 = vmul.f32 %v613, %v625
  %v650 = vmul.f32 %v614, %v625
  %v651 = vmul.f32 %v615, %v625
  %v652 = vmul.f32 %v616, %v625
  %v653 = vmul.f32 %v617, %v625
  %v654 = vmul.f32 %v618, %v625
  %v655 = vmul.f32 %v619, %v625
  %v656 = vmul.f32 %v620, %v625
  %v657 = vmul.f32 %v621, %v625
  %v658 = vlaneseq
  %v659 = vshrl.u32 %v658, 7
  %v660 = vsub.s32 2, %v659
  %v661 = vrot.slane %v48, %v660
  %v662 = vadd.f32 %v626, %v661
  %v663 = vadd.f32 %v627, %v661
  %v664 = vadd.f32 %v628, %v661
  %v665 = vadd.f32 %v629, %v661
  %v666 = vadd.f32 %v630, %v661
  %v667 = vadd.f32 %v631, %v661
  %v668 = vadd.f32 %v632, %v661
  %v669 = vadd.f32 %v633, %v661
  %v670 = vadd.f32 %v634, %v661
  %v671 = vadd.f32 %v635, %v661
  %v672 = vadd.f32 %v636, %v661
  %v673 = vadd.f32 %v637, %v661
  %v674 = vadd.f32 %v638, %v661
  %v675 = vadd.f32 %v639, %v661
  %v676 = vadd.f32 %v640, %v661
  %v677 = vadd.f32 %v641, %v661
  %v678 = vadd.f32 %v642, %v661
  %v679 = vadd.f32 %v643, %v661
  %v680 = vadd.f32 %v644, %v661
  %v681 = vadd.f32 %v645, %v661
  %v682 = vadd.f32 %v646, %v661
  %v683 = vadd.f32 %v647, %v661
  %v684 = vadd.f32 %v648, %v661
  %v685 = vadd.f32 %v649, %v661
  %v686 = vadd.f32 %v650, %v661
  %v687 = vadd.f32 %v651, %v661
  %v688 = vadd.f32 %v652, %v661
  %v689 = vadd.f32 %v653, %v661
  %v690 = vadd.f32 %v654, %v661
  %v691 = vadd.f32 %v655, %v661
  %v692 = vadd.f32 %v656, %v661
  %v693 = vadd.f32 %v657, %v661
  %v694 = vpack.c.bf16 %v663, %v662
  %v695 = vpack.c.bf16 %v665, %v664
  %v696 = vpack.c.bf16 %v667, %v666
  %v697 = vpack.c.bf16 %v669, %v668
  %v698 = vpack.c.bf16 %v671, %v670
  %v699 = vpack.c.bf16 %v673, %v672
  %v700 = vpack.c.bf16 %v675, %v674
  %v701 = vpack.c.bf16 %v677, %v676
  %v702 = vpack.c.bf16 %v679, %v678
  %v703 = vpack.c.bf16 %v681, %v680
  %v704 = vpack.c.bf16 %v683, %v682
  %v705 = vpack.c.bf16 %v685, %v684
  %v706 = vpack.c.bf16 %v687, %v686
  %v707 = vpack.c.bf16 %v689, %v688
  %v708 = vpack.c.bf16 %v691, %v690
  %v709 = vpack.c.bf16 %v693, %v692
  %v710 = vlaneseq
  %v711 = vshrl.u32 %v710, 7
  %v712 = vsub.s32 3, %v711
  %v713 = vrot.slane %v48, %v712
  %v730 = vunpack.c.l.b16 %v13
  %v731 = vunpack.c.l.b16 %v14
  %v732 = vunpack.c.l.b16 %v15
  %v733 = vunpack.c.l.b16 %v16
  %v734 = vunpack.c.l.b16 %v17
  %v735 = vunpack.c.l.b16 %v18
  %v736 = vunpack.c.l.b16 %v19
  %v737 = vunpack.c.l.b16 %v20
  %v738 = vunpack.c.l.b16 %v21
  %v739 = vunpack.c.l.b16 %v22
  %v740 = vunpack.c.l.b16 %v23
  %v741 = vunpack.c.l.b16 %v24
  %v742 = vunpack.c.l.b16 %v25
  %v743 = vunpack.c.l.b16 %v26
  %v744 = vunpack.c.l.b16 %v27
  %v745 = vunpack.c.l.b16 %v28
  %v746 = vpack.c.b16 %v731, %v730
  %v747 = vpack.c.b16 %v733, %v732
  %v748 = vpack.c.b16 %v735, %v734
  %v749 = vpack.c.b16 %v737, %v736
  %v750 = vpack.c.b16 %v739, %v738
  %v751 = vpack.c.b16 %v741, %v740
  %v752 = vpack.c.b16 %v743, %v742
  %v753 = vpack.c.b16 %v745, %v744
  %762 = vmatprep.subr.bf16.mxu0 0
  %763 = vmatpush1.bf16.msra.mxu0 %v746
  %764 = vmatprep.subr.bf16.mxu0 0
  %765 = vmatpush1.bf16.msra.mxu0 %v747
  %766 = vmatprep.subr.bf16.mxu0 0
  %767 = vmatpush1.bf16.msra.mxu0 %v748
  %768 = vmatprep.subr.bf16.mxu0 0
  %769 = vmatpush1.bf16.msra.mxu0 %v749
  %770 = vmatprep.subr.bf16.mxu0 0
  %771 = vmatpush1.bf16.msra.mxu0 %v750
  %772 = vmatprep.subr.bf16.mxu0 0
  %773 = vmatpush1.bf16.msra.mxu0 %v751
  %774 = vmatprep.subr.bf16.mxu0 0
  %775 = vmatpush1.bf16.msra.mxu0 %v752
  %776 = vmatprep.subr.bf16.mxu0 0
  %777 = vmatpush1.bf16.msra.mxu0 %v753
  %778 = vmatprep.subr.bf16.mxu0 0
  %779 = vmatpush1.bf16.msra.mxu0 0
  %780 = vmatprep.subr.bf16.mxu0 0
  %781 = vmatpush1.bf16.msra.mxu0 0
  %782 = vmatprep.subr.bf16.mxu0 0
  %783 = vmatpush1.bf16.msra.mxu0 0
  %784 = vmatprep.subr.bf16.mxu0 0
  %785 = vmatpush1.bf16.msra.mxu0 0
  %786 = vmatprep.subr.bf16.mxu0 0
  %787 = vmatpush1.bf16.msra.mxu0 0
  %788 = vmatprep.subr.bf16.mxu0 0
  %789 = vmatpush1.bf16.msra.mxu0 0
  %790 = vmatprep.subr.bf16.mxu0 0
  %791 = vmatpush1.bf16.msra.mxu0 0
  %792 = vmatprep.subr.bf16.mxu0 0
  %793 = vmatpush1.bf16.msra.mxu0 0
  %794 = vmatprep.mubr.bf16.mxu0 0
  %795 = vmatmul.mubr.bf16.gmra.mrb[0].mxu0 %v694
  %v796 = vpop.f32.mrb[0].mxu0
  %v797 = vadd.f32 %v713, %v796
  %v798 = vpop.f32.mrb[0].mxu0
  %v799 = vpop.f32.mrb[0].mxu0
  %v800 = vadd.f32 %v713, %v799
  %v801 = vpop.f32.mrb[0].mxu0
  %802 = vmatprep.mubr.bf16.mxu0 0
  %803 = vmatmul.mubr.bf16.gmra.mrb[0].mxu0 %v695
  %v804 = vpop.f32.mrb[0].mxu0
  %v805 = vadd.f32 %v713, %v804
  %v806 = vpop.f32.mrb[0].mxu0
  %v807 = vpop.f32.mrb[0].mxu0
  %v808 = vadd.f32 %v713, %v807
  %v809 = vpop.f32.mrb[0].mxu0
  %810 = vmatprep.mubr.bf16.mxu0 0
  %811 = vmatmul.mubr.bf16.gmra.mrb[0].mxu0 %v696
  %v812 = vpop.f32.mrb[0].mxu0
  %v813 = vadd.f32 %v713, %v812
  %v814 = vpop.f32.mrb[0].mxu0
  %v815 = vpop.f32.mrb[0].mxu0
  %v816 = vadd.f32 %v713, %v815
  %v817 = vpop.f32.mrb[0].mxu0
  %818 = vmatprep.mubr.bf16.mxu0 0
  %819 = vmatmul.mubr.bf16.gmra.mrb[0].mxu0 %v697
  %v820 = vpop.f32.mrb[0].mxu0
  %v821 = vadd.f32 %v713, %v820
  %v822 = vpop.f32.mrb[0].mxu0
  %v823 = vpop.f32.mrb[0].mxu0
  %v824 = vadd.f32 %v713, %v823
  %v825 = vpop.f32.mrb[0].mxu0
  %826 = vmatprep.mubr.bf16.mxu0 0
  %827 = vmatmul.mubr.bf16.gmra.mrb[0].mxu0 %v698
  %v828 = vpop.f32.mrb[0].mxu0
  %v829 = vadd.f32 %v713, %v828
  %v830 = vpop.f32.mrb[0].mxu0
  %v831 = vpop.f32.mrb[0].mxu0
  %v832 = vadd.f32 %v713, %v831
  %v833 = vpop.f32.mrb[0].mxu0
  %834 = vmatprep.mubr.bf16.mxu0 0
  %835 = vmatmul.mubr.bf16.gmra.mrb[0].mxu0 %v699
  %v836 = vpop.f32.mrb[0].mxu0
  %v837 = vadd.f32 %v713, %v836
  %v838 = vpop.f32.mrb[0].mxu0
  %v839 = vpop.f32.mrb[0].mxu0
  %v840 = vadd.f32 %v713, %v839
  %v841 = vpop.f32.mrb[0].mxu0
  %842 = vmatprep.mubr.bf16.mxu0 0
  %843 = vmatmul.mubr.bf16.gmra.mrb[0].mxu0 %v700
  %v844 = vpop.f32.mrb[0].mxu0
  %v845 = vadd.f32 %v713, %v844
  %v846 = vpop.f32.mrb[0].mxu0
  %v847 = vpop.f32.mrb[0].mxu0
  %v848 = vadd.f32 %v713, %v847
  %v849 = vpop.f32.mrb[0].mxu0
  %850 = vmatprep.mubr.bf16.mxu0 0
  %851 = vmatmul.mubr.bf16.gmra.mrb[0].mxu0 %v701
  %v852 = vpop.f32.mrb[0].mxu0
  %v853 = vadd.f32 %v713, %v852
  %v854 = vpop.f32.mrb[0].mxu0
  %v855 = vpop.f32.mrb[0].mxu0
  %v856 = vadd.f32 %v713, %v855
  %v857 = vpop.f32.mrb[0].mxu0
  %858 = vmatprep.mubr.bf16.mxu0 0
  %859 = vmatmul.mubr.bf16.gmra.mrb[0].mxu0 %v702
  %v860 = vpop.f32.mrb[0].mxu0
  %v861 = vadd.f32 %v713, %v860
  %v862 = vpop.f32.mrb[0].mxu0
  %v863 = vpop.f32.mrb[0].mxu0
  %v864 = vadd.f32 %v713, %v863
  %v865 = vpop.f32.mrb[0].mxu0
  %866 = vmatprep.mubr.bf16.mxu0 0
  %867 = vmatmul.mubr.bf16.gmra.mrb[0].mxu0 %v703
  %v868 = vpop.f32.mrb[0].mxu0
  %v869 = vadd.f32 %v713, %v868
  %v870 = vpop.f32.mrb[0].mxu0
  %v871 = vpop.f32.mrb[0].mxu0
  %v872 = vadd.f32 %v713, %v871
  %v873 = vpop.f32.mrb[0].mxu0
  %874 = vmatprep.mubr.bf16.mxu0 0
  %875 = vmatmul.mubr.bf16.gmra.mrb[0].mxu0 %v704
  %v876 = vpop.f32.mrb[0].mxu0
  %v877 = vadd.f32 %v713, %v876
  %v878 = vpop.f32.mrb[0].mxu0
  %v879 = vpop.f32.mrb[0].mxu0
  %v880 = vadd.f32 %v713, %v879
  %v881 = vpop.f32.mrb[0].mxu0
  %882 = vmatprep.mubr.bf16.mxu0 0
  %883 = vmatmul.mubr.bf16.gmra.mrb[0].mxu0 %v705
  %v884 = vpop.f32.mrb[0].mxu0
  %v885 = vadd.f32 %v713, %v884
  %v886 = vpop.f32.mrb[0].mxu0
  %v887 = vpop.f32.mrb[0].mxu0
  %v888 = vadd.f32 %v713, %v887
  %v889 = vpop.f32.mrb[0].mxu0
  %890 = vmatprep.mubr.bf16.mxu0 0
  %891 = vmatmul.mubr.bf16.gmra.mrb[0].mxu0 %v706
  %v892 = vpop.f32.mrb[0].mxu0
  %v893 = vadd.f32 %v713, %v892
  %v894 = vpop.f32.mrb[0].mxu0
  %v895 = vpop.f32.mrb[0].mxu0
  %v896 = vadd.f32 %v713, %v895
  %v897 = vpop.f32.mrb[0].mxu0
  %898 = vmatprep.mubr.bf16.mxu0 0
  %899 = vmatmul.mubr.bf16.gmra.mrb[0].mxu0 %v707
  %v900 = vpop.f32.mrb[0].mxu0
  %v901 = vadd.f32 %v713, %v900
  %v902 = vpop.f32.mrb[0].mxu0
  %v903 = vpop.f32.mrb[0].mxu0
  %v904 = vadd.f32 %v713, %v903
  %v905 = vpop.f32.mrb[0].mxu0
  %906 = vmatprep.mubr.bf16.mxu0 0
  %907 = vmatmul.mubr.bf16.gmra.mrb[0].mxu0 %v708
  %v908 = vpop.f32.mrb[0].mxu0
  %v909 = vadd.f32 %v713, %v908
  %v910 = vpop.f32.mrb[0].mxu0
  %v911 = vpop.f32.mrb[0].mxu0
  %v912 = vadd.f32 %v713, %v911
  %v913 = vpop.f32.mrb[0].mxu0
  %914 = vmatprep.mubr.bf16.mxu0 0
  %915 = vmatmul.mubr.bf16.gmra.mrb[0].mxu0 %v709
  %v916 = vpop.f32.mrb[0].mxu0
  %v917 = vadd.f32 %v713, %v916
  %v918 = vpop.f32.mrb[0].mxu0
  %v919 = vpop.f32.mrb[0].mxu0
  %v920 = vadd.f32 %v713, %v919
  %v921 = vpop.f32.mrb[0].mxu0
  %922 = vdwg.mxu0
  %v923 = vmul.f32 %v797, 0.5
  %v924 = vmul.f32 %v800, 0.5
  %v925 = vmul.f32 %v805, 0.5
  %v926 = vmul.f32 %v808, 0.5
  %v927 = vmul.f32 %v813, 0.5
  %v928 = vmul.f32 %v816, 0.5
  %v929 = vmul.f32 %v821, 0.5
  %v930 = vmul.f32 %v824, 0.5
  %v931 = vmul.f32 %v829, 0.5
  %v932 = vmul.f32 %v832, 0.5
  %v933 = vmul.f32 %v837, 0.5
  %v934 = vmul.f32 %v840, 0.5
  %v935 = vmul.f32 %v845, 0.5
  %v936 = vmul.f32 %v848, 0.5
  %v937 = vmul.f32 %v853, 0.5
  %v938 = vmul.f32 %v856, 0.5
  %v939 = vmul.f32 %v861, 0.5
  %v940 = vmul.f32 %v864, 0.5
  %v941 = vmul.f32 %v869, 0.5
  %v942 = vmul.f32 %v872, 0.5
  %v943 = vmul.f32 %v877, 0.5
  %v944 = vmul.f32 %v880, 0.5
  %v945 = vmul.f32 %v885, 0.5
  %v946 = vmul.f32 %v888, 0.5
  %v947 = vmul.f32 %v893, 0.5
  %v948 = vmul.f32 %v896, 0.5
  %v949 = vmul.f32 %v901, 0.5
  %v950 = vmul.f32 %v904, 0.5
  %v951 = vmul.f32 %v909, 0.5
  %v952 = vmul.f32 %v912, 0.5
  %v953 = vmul.f32 %v917, 0.5
  %v954 = vmul.f32 %v920, 0.5
  %v955 = vtanh.pop %v923
  %v956 = vtanh.pop %v924
  %v957 = vtanh.pop %v925
  %v958 = vtanh.pop %v926
  %v959 = vtanh.pop %v927
  %v960 = vtanh.pop %v928
  %v961 = vtanh.pop %v929
  %v962 = vtanh.pop %v930
  %v963 = vtanh.pop %v931
  %v964 = vtanh.pop %v932
  %v965 = vtanh.pop %v933
  %v966 = vtanh.pop %v934
  %v967 = vtanh.pop %v935
  %v968 = vtanh.pop %v936
  %v969 = vtanh.pop %v937
  %v970 = vtanh.pop %v938
  %v971 = vtanh.pop %v939
  %v972 = vtanh.pop %v940
  %v973 = vtanh.pop %v941
  %v974 = vtanh.pop %v942
  %v975 = vtanh.pop %v943
  %v976 = vtanh.pop %v944
  %v977 = vtanh.pop %v945
  %v978 = vtanh.pop %v946
  %v979 = vtanh.pop %v947
  %v980 = vtanh.pop %v948
  %v981 = vtanh.pop %v949
  %v982 = vtanh.pop %v950
  %v983 = vtanh.pop %v951
  %v984 = vtanh.pop %v952
  %v985 = vtanh.pop %v953
  %v986 = vtanh.pop %v954
  %v987 = vadd.f32 %v955, 1.0
  %v988 = vadd.f32 %v956, 1.0
  %v989 = vadd.f32 %v957, 1.0
  %v990 = vadd.f32 %v958, 1.0
  %v991 = vadd.f32 %v959, 1.0
  %v992 = vadd.f32 %v960, 1.0
  %v993 = vadd.f32 %v961, 1.0
  %v994 = vadd.f32 %v962, 1.0
  %v995 = vadd.f32 %v963, 1.0
  %v996 = vadd.f32 %v964, 1.0
  %v997 = vadd.f32 %v965, 1.0
  %v998 = vadd.f32 %v966, 1.0
  %v999 = vadd.f32 %v967, 1.0
  %v1000 = vadd.f32 %v968, 1.0
  %v1001 = vadd.f32 %v969, 1.0
  %v1002 = vadd.f32 %v970, 1.0
  %v1003 = vadd.f32 %v971, 1.0
  %v1004 = vadd.f32 %v972, 1.0
  %v1005 = vadd.f32 %v973, 1.0
  %v1006 = vadd.f32 %v974, 1.0
  %v1007 = vadd.f32 %v975, 1.0
  %v1008 = vadd.f32 %v976, 1.0
  %v1009 = vadd.f32 %v977, 1.0
  %v1010 = vadd.f32 %v978, 1.0
  %v1011 = vadd.f32 %v979, 1.0
  %v1012 = vadd.f32 %v980, 1.0
  %v1013 = vadd.f32 %v981, 1.0
  %v1014 = vadd.f32 %v982, 1.0
  %v1015 = vadd.f32 %v983, 1.0
  %v1016 = vadd.f32 %v984, 1.0
  %v1017 = vadd.f32 %v985, 1.0
  %v1018 = vadd.f32 %v986, 1.0
  %v1019 = vmul.f32 %v923, %v987
  %v1020 = vmul.f32 %v924, %v988
  %v1021 = vmul.f32 %v925, %v989
  %v1022 = vmul.f32 %v926, %v990
  %v1023 = vmul.f32 %v927, %v991
  %v1024 = vmul.f32 %v928, %v992
  %v1025 = vmul.f32 %v929, %v993
  %v1026 = vmul.f32 %v930, %v994
  %v1027 = vmul.f32 %v931, %v995
  %v1028 = vmul.f32 %v932, %v996
  %v1029 = vmul.f32 %v933, %v997
  %v1030 = vmul.f32 %v934, %v998
  %v1031 = vmul.f32 %v935, %v999
  %v1032 = vmul.f32 %v936, %v1000
  %v1033 = vmul.f32 %v937, %v1001
  %v1034 = vmul.f32 %v938, %v1002
  %v1035 = vmul.f32 %v939, %v1003
  %v1036 = vmul.f32 %v940, %v1004
  %v1037 = vmul.f32 %v941, %v1005
  %v1038 = vmul.f32 %v942, %v1006
  %v1039 = vmul.f32 %v943, %v1007
  %v1040 = vmul.f32 %v944, %v1008
  %v1041 = vmul.f32 %v945, %v1009
  %v1042 = vmul.f32 %v946, %v1010
  %v1043 = vmul.f32 %v947, %v1011
  %v1044 = vmul.f32 %v948, %v1012
  %v1045 = vmul.f32 %v949, %v1013
  %v1046 = vmul.f32 %v950, %v1014
  %v1047 = vmul.f32 %v951, %v1015
  %v1048 = vmul.f32 %v952, %v1016
  %v1049 = vmul.f32 %v953, %v1017
  %v1050 = vmul.f32 %v954, %v1018
  %v1051 = vpack.c.bf16 %v1020, %v1019
  %v1052 = vpack.c.bf16 %v1022, %v1021
  %v1053 = vpack.c.bf16 %v1024, %v1023
  %v1054 = vpack.c.bf16 %v1026, %v1025
  %v1055 = vpack.c.bf16 %v1028, %v1027
  %v1056 = vpack.c.bf16 %v1030, %v1029
  %v1057 = vpack.c.bf16 %v1032, %v1031
  %v1058 = vpack.c.bf16 %v1034, %v1033
  %v1059 = vpack.c.bf16 %v1036, %v1035
  %v1060 = vpack.c.bf16 %v1038, %v1037
  %v1061 = vpack.c.bf16 %v1040, %v1039
  %v1062 = vpack.c.bf16 %v1042, %v1041
  %v1063 = vpack.c.bf16 %v1044, %v1043
  %v1064 = vpack.c.bf16 %v1046, %v1045
  %v1065 = vpack.c.bf16 %v1048, %v1047
  %v1066 = vpack.c.bf16 %v1050, %v1049
  %v1067 = vlaneseq
  %v1068 = vshrl.u32 %v1067, 7
  %v1069 = vsub.s32 4, %v1068
  %v1070 = vrot.slane %v50, %v1069
  %v1087 = vunpack.c.l.b16 %v29
  %v1088 = vunpack.c.l.b16 %v30
  %v1089 = vunpack.c.l.b16 %v31
  %v1090 = vunpack.c.l.b16 %v32
  %v1091 = vunpack.c.l.b16 %v33
  %v1092 = vunpack.c.l.b16 %v34
  %v1093 = vunpack.c.l.b16 %v35
  %v1094 = vunpack.c.l.b16 %v36
  %v1095 = vunpack.c.l.b16 %v37
  %v1096 = vunpack.c.l.b16 %v38
  %v1097 = vunpack.c.l.b16 %v39
  %v1098 = vunpack.c.l.b16 %v40
  %v1099 = vunpack.c.l.b16 %v41
  %v1100 = vunpack.c.l.b16 %v42
  %v1101 = vunpack.c.l.b16 %v43
  %v1102 = vunpack.c.l.b16 %v44
  %v1103 = vpack.c.b16 %v1088, %v1087
  %v1104 = vpack.c.b16 %v1090, %v1089
  %v1105 = vpack.c.b16 %v1092, %v1091
  %v1106 = vpack.c.b16 %v1094, %v1093
  %v1107 = vpack.c.b16 %v1096, %v1095
  %v1108 = vpack.c.b16 %v1098, %v1097
  %v1109 = vpack.c.b16 %v1100, %v1099
  %v1110 = vpack.c.b16 %v1102, %v1101
  %1119 = vmatprep.subr.bf16.mxu0 0
  %1120 = vmatpush1.bf16.msra.mxu0 %v1103
  %1121 = vmatprep.subr.bf16.mxu0 0
  %1122 = vmatpush1.bf16.msra.mxu0 %v1104
  %1123 = vmatprep.subr.bf16.mxu0 0
  %1124 = vmatpush1.bf16.msra.mxu0 %v1105
  %1125 = vmatprep.subr.bf16.mxu0 0
  %1126 = vmatpush1.bf16.msra.mxu0 %v1106
  %1127 = vmatprep.subr.bf16.mxu0 0
  %1128 = vmatpush1.bf16.msra.mxu0 %v1107
  %1129 = vmatprep.subr.bf16.mxu0 0
  %1130 = vmatpush1.bf16.msra.mxu0 %v1108
  %1131 = vmatprep.subr.bf16.mxu0 0
  %1132 = vmatpush1.bf16.msra.mxu0 %v1109
  %1133 = vmatprep.subr.bf16.mxu0 0
  %1134 = vmatpush1.bf16.msra.mxu0 %v1110
  %1135 = vmatprep.subr.bf16.mxu0 0
  %1136 = vmatpush1.bf16.msra.mxu0 0
  %1137 = vmatprep.subr.bf16.mxu0 0
  %1138 = vmatpush1.bf16.msra.mxu0 0
  %1139 = vmatprep.subr.bf16.mxu0 0
  %1140 = vmatpush1.bf16.msra.mxu0 0
  %1141 = vmatprep.subr.bf16.mxu0 0
  %1142 = vmatpush1.bf16.msra.mxu0 0
  %1143 = vmatprep.subr.bf16.mxu0 0
  %1144 = vmatpush1.bf16.msra.mxu0 0
  %1145 = vmatprep.subr.bf16.mxu0 0
  %1146 = vmatpush1.bf16.msra.mxu0 0
  %1147 = vmatprep.subr.bf16.mxu0 0
  %1148 = vmatpush1.bf16.msra.mxu0 0
  %1149 = vmatprep.subr.bf16.mxu0 0
  %1150 = vmatpush1.bf16.msra.mxu0 0
  %1151 = vmatprep.mubr.bf16.mxu0 0
  %1152 = vmatmul.mubr.bf16.gmra.mrb[0].mxu0 %v1051
  %v1153 = vpop.f32.mrb[0].mxu0
  %v1154 = vadd.f32 %v1070, %v1153
  %v1155 = vpop.f32.mrb[0].mxu0
  %v1156 = vpop.f32.mrb[0].mxu0
  %v1157 = vadd.f32 %v1070, %v1156
  %v1158 = vpop.f32.mrb[0].mxu0
  %1159 = vmatprep.mubr.bf16.mxu0 0
  %1160 = vmatmul.mubr.bf16.gmra.mrb[0].mxu0 %v1052
  %v1161 = vpop.f32.mrb[0].mxu0
  %v1162 = vadd.f32 %v1070, %v1161
  %v1163 = vpop.f32.mrb[0].mxu0
  %v1164 = vpop.f32.mrb[0].mxu0
  %v1165 = vadd.f32 %v1070, %v1164
  %v1166 = vpop.f32.mrb[0].mxu0
  %1167 = vmatprep.mubr.bf16.mxu0 0
  %1168 = vmatmul.mubr.bf16.gmra.mrb[0].mxu0 %v1053
  %v1169 = vpop.f32.mrb[0].mxu0
  %v1170 = vadd.f32 %v1070, %v1169
  %v1171 = vpop.f32.mrb[0].mxu0
  %v1172 = vpop.f32.mrb[0].mxu0
  %v1173 = vadd.f32 %v1070, %v1172
  %v1174 = vpop.f32.mrb[0].mxu0
  %1175 = vmatprep.mubr.bf16.mxu0 0
  %1176 = vmatmul.mubr.bf16.gmra.mrb[0].mxu0 %v1054
  %v1177 = vpop.f32.mrb[0].mxu0
  %v1178 = vadd.f32 %v1070, %v1177
  %v1179 = vpop.f32.mrb[0].mxu0
  %v1180 = vpop.f32.mrb[0].mxu0
  %v1181 = vadd.f32 %v1070, %v1180
  %v1182 = vpop.f32.mrb[0].mxu0
  %1183 = vmatprep.mubr.bf16.mxu0 0
  %1184 = vmatmul.mubr.bf16.gmra.mrb[0].mxu0 %v1055
  %v1185 = vpop.f32.mrb[0].mxu0
  %v1186 = vadd.f32 %v1070, %v1185
  %v1187 = vpop.f32.mrb[0].mxu0
  %v1188 = vpop.f32.mrb[0].mxu0
  %v1189 = vadd.f32 %v1070, %v1188
  %v1190 = vpop.f32.mrb[0].mxu0
  %1191 = vmatprep.mubr.bf16.mxu0 0
  %1192 = vmatmul.mubr.bf16.gmra.mrb[0].mxu0 %v1056
  %v1193 = vpop.f32.mrb[0].mxu0
  %v1194 = vadd.f32 %v1070, %v1193
  %v1195 = vpop.f32.mrb[0].mxu0
  %v1196 = vpop.f32.mrb[0].mxu0
  %v1197 = vadd.f32 %v1070, %v1196
  %v1198 = vpop.f32.mrb[0].mxu0
  %1199 = vmatprep.mubr.bf16.mxu0 0
  %1200 = vmatmul.mubr.bf16.gmra.mrb[0].mxu0 %v1057
  %v1201 = vpop.f32.mrb[0].mxu0
  %v1202 = vadd.f32 %v1070, %v1201
  %v1203 = vpop.f32.mrb[0].mxu0
  %v1204 = vpop.f32.mrb[0].mxu0
  %v1205 = vadd.f32 %v1070, %v1204
  %v1206 = vpop.f32.mrb[0].mxu0
  %1207 = vmatprep.mubr.bf16.mxu0 0
  %1208 = vmatmul.mubr.bf16.gmra.mrb[0].mxu0 %v1058
  %v1209 = vpop.f32.mrb[0].mxu0
  %v1210 = vadd.f32 %v1070, %v1209
  %v1211 = vpop.f32.mrb[0].mxu0
  %v1212 = vpop.f32.mrb[0].mxu0
  %v1213 = vadd.f32 %v1070, %v1212
  %v1214 = vpop.f32.mrb[0].mxu0
  %1215 = vmatprep.mubr.bf16.mxu0 0
  %1216 = vmatmul.mubr.bf16.gmra.mrb[0].mxu0 %v1059
  %v1217 = vpop.f32.mrb[0].mxu0
  %v1218 = vadd.f32 %v1070, %v1217
  %v1219 = vpop.f32.mrb[0].mxu0
  %v1220 = vpop.f32.mrb[0].mxu0
  %v1221 = vadd.f32 %v1070, %v1220
  %v1222 = vpop.f32.mrb[0].mxu0
  %1223 = vmatprep.mubr.bf16.mxu0 0
  %1224 = vmatmul.mubr.bf16.gmra.mrb[0].mxu0 %v1060
  %v1225 = vpop.f32.mrb[0].mxu0
  %v1226 = vadd.f32 %v1070, %v1225
  %v1227 = vpop.f32.mrb[0].mxu0
  %v1228 = vpop.f32.mrb[0].mxu0
  %v1229 = vadd.f32 %v1070, %v1228
  %v1230 = vpop.f32.mrb[0].mxu0
  %1231 = vmatprep.mubr.bf16.mxu0 0
  %1232 = vmatmul.mubr.bf16.gmra.mrb[0].mxu0 %v1061
  %v1233 = vpop.f32.mrb[0].mxu0
  %v1234 = vadd.f32 %v1070, %v1233
  %v1235 = vpop.f32.mrb[0].mxu0
  %v1236 = vpop.f32.mrb[0].mxu0
  %v1237 = vadd.f32 %v1070, %v1236
  %v1238 = vpop.f32.mrb[0].mxu0
  %1239 = vmatprep.mubr.bf16.mxu0 0
  %1240 = vmatmul.mubr.bf16.gmra.mrb[0].mxu0 %v1062
  %v1241 = vpop.f32.mrb[0].mxu0
  %v1242 = vadd.f32 %v1070, %v1241
  %v1243 = vpop.f32.mrb[0].mxu0
  %v1244 = vpop.f32.mrb[0].mxu0
  %v1245 = vadd.f32 %v1070, %v1244
  %v1246 = vpop.f32.mrb[0].mxu0
  %1247 = vmatprep.mubr.bf16.mxu0 0
  %1248 = vmatmul.mubr.bf16.gmra.mrb[0].mxu0 %v1063
  %v1249 = vpop.f32.mrb[0].mxu0
  %v1250 = vadd.f32 %v1070, %v1249
  %v1251 = vpop.f32.mrb[0].mxu0
  %v1252 = vpop.f32.mrb[0].mxu0
  %v1253 = vadd.f32 %v1070, %v1252
  %v1254 = vpop.f32.mrb[0].mxu0
  %1255 = vmatprep.mubr.bf16.mxu0 0
  %1256 = vmatmul.mubr.bf16.gmra.mrb[0].mxu0 %v1064
  %v1257 = vpop.f32.mrb[0].mxu0
  %v1258 = vadd.f32 %v1070, %v1257
  %v1259 = vpop.f32.mrb[0].mxu0
  %v1260 = vpop.f32.mrb[0].mxu0
  %v1261 = vadd.f32 %v1070, %v1260
  %v1262 = vpop.f32.mrb[0].mxu0
  %1263 = vmatprep.mubr.bf16.mxu0 0
  %1264 = vmatmul.mubr.bf16.gmra.mrb[0].mxu0 %v1065
  %v1265 = vpop.f32.mrb[0].mxu0
  %v1266 = vadd.f32 %v1070, %v1265
  %v1267 = vpop.f32.mrb[0].mxu0
  %v1268 = vpop.f32.mrb[0].mxu0
  %v1269 = vadd.f32 %v1070, %v1268
  %v1270 = vpop.f32.mrb[0].mxu0
  %1271 = vmatprep.mubr.bf16.mxu0 0
  %1272 = vmatmul.mubr.bf16.gmra.mrb[0].mxu0 %v1066
  %v1273 = vpop.f32.mrb[0].mxu0
  %v1274 = vadd.f32 %v1070, %v1273
  %v1275 = vpop.f32.mrb[0].mxu0
  %v1276 = vpop.f32.mrb[0].mxu0
  %v1277 = vadd.f32 %v1070, %v1276
  %v1278 = vpop.f32.mrb[0].mxu0
  %1279 = vdwg.mxu0
  %v1280 = vtanh.pop %v1154
  %v1281 = vtanh.pop %v1157
  %v1282 = vtanh.pop %v1162
  %v1283 = vtanh.pop %v1165
  %v1284 = vtanh.pop %v1170
  %v1285 = vtanh.pop %v1173
  %v1286 = vtanh.pop %v1178
  %v1287 = vtanh.pop %v1181
  %v1288 = vtanh.pop %v1186
  %v1289 = vtanh.pop %v1189
  %v1290 = vtanh.pop %v1194
  %v1291 = vtanh.pop %v1197
  %v1292 = vtanh.pop %v1202
  %v1293 = vtanh.pop %v1205
  %v1294 = vtanh.pop %v1210
  %v1295 = vtanh.pop %v1213
  %v1296 = vtanh.pop %v1218
  %v1297 = vtanh.pop %v1221
  %v1298 = vtanh.pop %v1226
  %v1299 = vtanh.pop %v1229
  %v1300 = vtanh.pop %v1234
  %v1301 = vtanh.pop %v1237
  %v1302 = vtanh.pop %v1242
  %v1303 = vtanh.pop %v1245
  %v1304 = vtanh.pop %v1250
  %v1305 = vtanh.pop %v1253
  %v1306 = vtanh.pop %v1258
  %v1307 = vtanh.pop %v1261
  %v1308 = vtanh.pop %v1266
  %v1309 = vtanh.pop %v1269
  %v1310 = vtanh.pop %v1274
  %v1311 = vtanh.pop %v1277
  %vm1312 = vcmask 15360
  %1313 = vst.msk [vmem:[%s2] sm:$0xff] %vm1312, %v1280
  %1314 = vst.msk [vmem:[%s2 + $0x8] sm:$0xff] %vm1312, %v1281
  %1315 = vst.msk [vmem:[%s2 + $0x10] sm:$0xff] %vm1312, %v1282
  %1316 = vst.msk [vmem:[%s2 + $0x18] sm:$0xff] %vm1312, %v1283
  %1317 = vst.msk [vmem:[%s2 + $0x20] sm:$0xff] %vm1312, %v1284
  %1318 = vst.msk [vmem:[%s2 + $0x28] sm:$0xff] %vm1312, %v1285
  %1319 = vst.msk [vmem:[%s2 + $0x30] sm:$0xff] %vm1312, %v1286
  %1320 = vst.msk [vmem:[%s2 + $0x38] sm:$0xff] %vm1312, %v1287
  %1321 = vst.msk [vmem:[%s2 + $0x40] sm:$0xff] %vm1312, %v1288
  %1322 = vst.msk [vmem:[%s2 + $0x48] sm:$0xff] %vm1312, %v1289
  %1323 = vst.msk [vmem:[%s2 + $0x50] sm:$0xff] %vm1312, %v1290
  %1324 = vst.msk [vmem:[%s2 + $0x58] sm:$0xff] %vm1312, %v1291
  %1325 = vst.msk [vmem:[%s2 + $0x60] sm:$0xff] %vm1312, %v1292
  %1326 = vst.msk [vmem:[%s2 + $0x68] sm:$0xff] %vm1312, %v1293
  %1327 = vst.msk [vmem:[%s2 + $0x70] sm:$0xff] %vm1312, %v1294
  %1328 = vst.msk [vmem:[%s2 + $0x78] sm:$0xff] %vm1312, %v1295
  %1329 = vst.msk [vmem:[%s2 + $0x80] sm:$0xff] %vm1312, %v1296
  %1330 = vst.msk [vmem:[%s2 + $0x88] sm:$0xff] %vm1312, %v1297
  %1331 = vst.msk [vmem:[%s2 + $0x90] sm:$0xff] %vm1312, %v1298
  %1332 = vst.msk [vmem:[%s2 + $0x98] sm:$0xff] %vm1312, %v1299
  %1333 = vst.msk [vmem:[%s2 + $0xa0] sm:$0xff] %vm1312, %v1300
  %1334 = vst.msk [vmem:[%s2 + $0xa8] sm:$0xff] %vm1312, %v1301
  %1335 = vst.msk [vmem:[%s2 + $0xb0] sm:$0xff] %vm1312, %v1302
  %1336 = vst.msk [vmem:[%s2 + $0xb8] sm:$0xff] %vm1312, %v1303
  %1337 = vst.msk [vmem:[%s2 + $0xc0] sm:$0xff] %vm1312, %v1304
  %1338 = vst.msk [vmem:[%s2 + $0xc8] sm:$0xff] %vm1312, %v1305
  %1339 = vst.msk [vmem:[%s2 + $0xd0] sm:$0xff] %vm1312, %v1306
  %1340 = vst.msk [vmem:[%s2 + $0xd8] sm:$0xff] %vm1312, %v1307
  %1341 = vst.msk [vmem:[%s2 + $0xe0] sm:$0xff] %vm1312, %v1308
  %1342 = vst.msk [vmem:[%s2 + $0xe8] sm:$0xff] %vm1312, %v1309
  %1343 = vst.msk [vmem:[%s2 + $0xf0] sm:$0xff] %vm1312, %v1310
  %1344 = vst.msk [vmem:[%s2 + $0xf8] sm:$0xff] %vm1312, %v1311
  // Predicated region
  $region10: #{tpu_custom_call.1} parent=0 // pred_check
    _
  $region11: #{tpu_custom_call.1} parent=0 // pred_check_branch
    %1346 = sbr.rel (0) target = $region13
  $region12: #{tpu_custom_call.1} parent=0 // pred_region
    _
  $region13: #{tpu_custom_call.1} parent=0 // pred_fallthru
    _
  // Predicated region
  $region14: #{tpu_custom_call.1} parent=0 // pred_check
    _
  $region15: #{tpu_custom_call.1} parent=0 // pred_check_branch
    %1348 = sbr.rel (0) target = $region17
  $region16: #{tpu_custom_call.1} parent=0 // pred_region
    _
  $region17: #{tpu_custom_call.1} parent=0 // pred_fallthru
    _

</llo_original>
